<compile_context>
chip_gen: v5e
topology: v5e:2x2
jax: 0.10.0
libtpu: 0.0.40
codegen_flags: <defaults>
</compile_context>

<pallas_src>
import jax
import jax.numpy as jnp
from jax.experimental import pallas as pl
from jax.experimental.pallas import tpu as pltpu

IN_DIM = 125
MID_DIM = 512
OUT_DIM = 100
IN_PAD = 128        # lane-aligned K for the first matmul
OUT_PAD = 128       # lane-dense output width (extra 28 lanes are exact zeros)
LEAKY_SLOPE = 0.01  # PyTorch nn.LeakyReLU default negative_slope


def policy_kernel(x_ref, w1_ref, b1_ref, w2_ref, b2_ref, w3_ref, b3_ref, o_ref):
    # Layer 1: Linear(IN_PAD -> MID) + LeakyReLU.
    # bf16 MXU inputs, f32 accumulation; activation in bf16 (the next dot
    # consumes bf16 anyway, so the cast is not extra work).
    h = jnp.dot(x_ref[...], w1_ref[...],
                preferred_element_type=jnp.float32) + b1_ref[...]
    h = h.astype(jnp.bfloat16)
    h = jnp.maximum(h, LEAKY_SLOPE * h)          # LeakyReLU: mul + max

    # Layer 2: Linear(MID -> MID) + LeakyReLU.
    h = jnp.dot(h, w2_ref[...],
                preferred_element_type=jnp.float32) + b2_ref[...]
    h = h.astype(jnp.bfloat16)
    h = jnp.maximum(h, LEAKY_SLOPE * h)

    # Layer 3: Linear(MID -> OUT_PAD) + Tanh (padded cols/bias are 0 -> tanh=0,
    # so the padded lanes do not perturb the L2 norm).
    y = jnp.tanh(jnp.dot(h, w3_ref[...],
                         preferred_element_type=jnp.float32) + b3_ref[...])

    # x / ||x||_2 over features via rsqrt * mul (EUP + VPU, no divide).
    # Like the PyTorch reference (explicit divide, not F.normalize), an
    # all-zero row would produce NaN.
    inv = jax.lax.rsqrt(jnp.sum(y * y, axis=-1, keepdims=True))
    o_ref[...] = y * inv


def _round_up(n, m):
    return ((n + m - 1) // m) * m


def _choose_tile(batch, block_m):
    """Pick (tm, n_steps): tm a multiple of 16 (bf16 sublane packing), padding
    waste bounded by ~16 rows per step, and >= 2 (even) grid steps whenever
    there is enough work so v7x can shard the batch across both TensorCores."""
    n_steps = pl.cdiv(batch, block_m)
    if n_steps == 1 and batch >= 32:
        n_steps = 2                      # enable megacore sharding on v7x
    elif n_steps > 1 and n_steps % 2 == 1:
        n_steps += 1                     # even split across the 2 TCs
    tm = _round_up(pl.cdiv(batch, n_steps), 16)
    return tm, n_steps


def prepare_params(params):
    """Pad weights to lane-aligned shapes; weights -> bf16, biases stay f32."""
    w1, b1, w2, b2, w3, b3 = params
    w1p = jnp.zeros((IN_PAD, MID_DIM), jnp.bfloat16).at[:IN_DIM, :].set(
        w1.astype(jnp.bfloat16))
    w3p = jnp.zeros((MID_DIM, OUT_PAD), jnp.bfloat16).at[:, :OUT_DIM].set(
        w3.astype(jnp.bfloat16))
    b3p = jnp.zeros((1, OUT_PAD), jnp.float32).at[:, :OUT_DIM].set(
        b3.reshape(1, -1).astype(jnp.float32))
    return (w1p, b1.reshape(1, -1).astype(jnp.float32),
            w2.astype(jnp.bfloat16), b2.reshape(1, -1).astype(jnp.float32),
            w3p, b3p)


def policy_forward(x, params, *, block_m=1024, slice_output=True):
    """x: (batch, 125) -> (batch, 100) f32, rows L2-normalized.

    slice_output=False returns the raw (padded_batch, 128) kernel output
    (extra lanes are exact zeros) so downstream code can skip the post-kernel
    XLA slice copy if it can consume the padded layout.
    """
    batch = x.shape[0]
    w1, b1, w2, b2, w3, b3 = prepare_params(params)

    tm, n_steps = _choose_tile(batch, block_m)
    padded_batch = tm * n_steps
    # Fused pad + bf16 cast in one XLA pass: halves x HBM traffic and the x
    # double-buffer, and removes the in-kernel pack of tm x 128 elements.
    x_p = jnp.pad(x, ((0, padded_batch - batch), (0, IN_PAD - IN_DIM))
                  ).astype(jnp.bfloat16)

    const = lambda shape: pl.BlockSpec(shape, lambda i: (0, 0))  # VMEM-resident

    out = pl.pallas_call(
        policy_kernel,
        out_shape=jax.ShapeDtypeStruct((padded_batch, OUT_PAD), jnp.float32),
        grid_spec=pltpu.PrefetchScalarGridSpec(
            num_scalar_prefetch=0,
            grid=(n_steps,),
            in_specs=[
                pl.BlockSpec((tm, IN_PAD), lambda i: (i, 0)),   # x tile (bf16)
                const((IN_PAD, MID_DIM)),                        # w1
                const((1, MID_DIM)),                             # b1
                const((MID_DIM, MID_DIM)),                       # w2
                const((1, MID_DIM)),                             # b2
                const((MID_DIM, OUT_PAD)),                       # w3 (padded)
                const((1, OUT_PAD)),                             # b3 (padded)
            ],
            out_specs=pl.BlockSpec((tm, OUT_PAD), lambda i: (i, 0)),
        ),
        compiler_params=pltpu.CompilerParams(
            dimension_semantics=("parallel",),      # v7x: batch over both TCs
            vmem_limit_bytes=32 * 1024 * 1024,      # headroom for tm>=1024 on v5e
        ),
    )(x_p, w1, b1, w2, b2, w3, b3)

    if not slice_output:
        return out
    return out[:batch, :OUT_DIM]


def init_params(key):
    """PyTorch-Linear-style init: U(-1/sqrt(fan_in), 1/sqrt(fan_in))."""
    def linear(k, fan_in, fan_out):
        kw, kb = jax.random.split(k)
        bound = 1.0 / jnp.sqrt(fan_in)
        w = jax.random.uniform(kw, (fan_in, fan_out), jnp.float32, -bound, bound)
        b = jax.random.uniform(kb, (1, fan_out), jnp.float32, -bound, bound)
        return w, b

    k1, k2, k3 = jax.random.split(key, 3)
    w1, b1 = linear(k1, IN_DIM, MID_DIM)
    w2, b2 = linear(k2, MID_DIM, MID_DIM)
    w3, b3 = linear(k3, MID_DIM, OUT_DIM)
    return (w1, b1, w2, b2, w3, b3)


def policy_reference(x, params):
    """Pure-f32 JAX reference (the PyTorch semantics)."""
    w1, b1, w2, b2, w3, b3 = params
    h = x @ w1 + b1
    h = jnp.where(h > 0, h, LEAKY_SLOPE * h)
    h = h @ w2 + b2
    h = jnp.where(h > 0, h, LEAKY_SLOPE * h)
    y = jnp.tanh(h @ w3 + b3)
    return y / jnp.linalg.norm(y, axis=-1, keepdims=True)


if __name__ == "__main__":
    key = jax.random.PRNGKey(0)
    k_params, k_x, k_x2 = jax.random.split(key, 3)

    params = init_params(k_params)
    fwd = jax.jit(policy_forward)   # fuse pad/cast + slice around the kernel

    # Small test: batch=2 -> single grid step.
    batch = 2
    x = jax.random.normal(k_x, (batch, IN_DIM), dtype=jnp.float32)
    out = jax.block_until_ready(fwd(x, params))
    ref = policy_reference(x, params)
    assert out.shape == (batch, OUT_DIM)
    # bf16 weights/activations vs pure-f32 reference -> loosened tolerance.
    assert jnp.max(jnp.abs(out - ref)) < 3e-2, "mismatch vs JAX reference (small)"
    assert jnp.allclose(jnp.linalg.norm(out, axis=-1), 1.0, atol=1e-3)

    # Multi-tile test: batch=272 -> forced 2-step grid (tm=144).
    batch2 = 272
    x2 = jax.random.normal(k_x2, (batch2, IN_DIM), dtype=jnp.float32)
    out2 = jax.block_until_ready(fwd(x2, params))
    ref2 = policy_reference(x2, params)
    assert out2.shape == (batch2, OUT_DIM)
    assert jnp.max(jnp.abs(out2 - ref2)) < 3e-2, "mismatch vs JAX reference (tiled)"
    assert jnp.allclose(jnp.linalg.norm(out2, axis=-1), 1.0, atol=1e-3)

    print("KERNEL_OK")
</pallas_src>

<mosaic_0001>
module attributes {stable_mosaic.version = 11 : i64} {
  func.func @policy_kernel(%arg0: i32, %arg1: memref<16x128xbf16, #tpu.memory_space<vmem>>, %arg2: memref<128x512xbf16, #tpu.memory_space<vmem>>, %arg3: memref<1x512xf32, #tpu.memory_space<vmem>>, %arg4: memref<512x512xbf16, #tpu.memory_space<vmem>>, %arg5: memref<1x512xf32, #tpu.memory_space<vmem>>, %arg6: memref<512x128xbf16, #tpu.memory_space<vmem>>, %arg7: memref<1x128xf32, #tpu.memory_space<vmem>>, %arg8: memref<16x128xf32, #tpu.memory_space<vmem>>) attributes {dimension_semantics = [#tpu.dimension_semantics<parallel>], iteration_bounds = array<i64: 1>, scalar_prefetch = 0 : i64, scratch_operands = 0 : i64, tpu.core_type = #tpu.core_type<tc>, window_params = [{transform_indices = @transform_0, window_bounds = array<i64: 16, 128>}, {pipeline_mode = #tpu.pipeline_mode<synchronous>, transform_indices = @transform_1, window_bounds = array<i64: 128, 512>}, {pipeline_mode = #tpu.pipeline_mode<synchronous>, transform_indices = @transform_2, window_bounds = array<i64: 1, 512>}, {pipeline_mode = #tpu.pipeline_mode<synchronous>, transform_indices = @transform_3, window_bounds = array<i64: 512, 512>}, {pipeline_mode = #tpu.pipeline_mode<synchronous>, transform_indices = @transform_4, window_bounds = array<i64: 1, 512>}, {pipeline_mode = #tpu.pipeline_mode<synchronous>, transform_indices = @transform_5, window_bounds = array<i64: 512, 128>}, {pipeline_mode = #tpu.pipeline_mode<synchronous>, transform_indices = @transform_6, window_bounds = array<i64: 1, 128>}, {transform_indices = @transform_7, window_bounds = array<i64: 16, 128>}]} {
    %c0 = arith.constant 0 : index
    %c0_0 = arith.constant 0 : index
    %0 = vector.load %arg1[%c0, %c0_0] : memref<16x128xbf16, #tpu.memory_space<vmem>>, vector<16x128xbf16>
    %c0_1 = arith.constant 0 : index
    %c0_2 = arith.constant 0 : index
    %1 = vector.load %arg2[%c0_1, %c0_2] : memref<128x512xbf16, #tpu.memory_space<vmem>>, vector<128x512xbf16>
    %cst = arith.constant dense<0.000000e+00> : vector<16x512xf32>
    %2 = tpu.matmul %0, %1, %cst {dimension_numbers = #tpu.dot_dimension_numbers<[1], [0], [0], [1], [0, 0, 1, 1], [], []>} : vector<16x128xbf16>, vector<128x512xbf16>, vector<16x512xf32> -> vector<16x512xf32>
    %c0_3 = arith.constant 0 : index
    %c0_4 = arith.constant 0 : index
    %3 = vector.load %arg3[%c0_3, %c0_4] : memref<1x512xf32, #tpu.memory_space<vmem>>, vector<1x512xf32>
    %4 = vector.broadcast %3 : vector<1x512xf32> to vector<16x512xf32>
    %5 = arith.addf %2, %4 : vector<16x512xf32>
    %6 = arith.truncf %5 : vector<16x512xf32> to vector<16x512xbf16>
    %cst_5 = arith.constant 1.000980e-02 : bf16
    %7 = vector.broadcast %cst_5 : bf16 to vector<16x512xbf16>
    %8 = arith.mulf %7, %6 : vector<16x512xbf16>
    %9 = arith.maximumf %6, %8 : vector<16x512xbf16>
    %c0_6 = arith.constant 0 : index
    %c0_7 = arith.constant 0 : index
    %10 = vector.load %arg4[%c0_6, %c0_7] : memref<512x512xbf16, #tpu.memory_space<vmem>>, vector<512x512xbf16>
    %cst_8 = arith.constant dense<0.000000e+00> : vector<16x512xf32>
    %11 = tpu.matmul %9, %10, %cst_8 {dimension_numbers = #tpu.dot_dimension_numbers<[1], [0], [0], [1], [0, 0, 1, 1], [], []>} : vector<16x512xbf16>, vector<512x512xbf16>, vector<16x512xf32> -> vector<16x512xf32>
    %c0_9 = arith.constant 0 : index
    %c0_10 = arith.constant 0 : index
    %12 = vector.load %arg5[%c0_9, %c0_10] : memref<1x512xf32, #tpu.memory_space<vmem>>, vector<1x512xf32>
    %13 = vector.broadcast %12 : vector<1x512xf32> to vector<16x512xf32>
    %14 = arith.addf %11, %13 : vector<16x512xf32>
    %15 = arith.truncf %14 : vector<16x512xf32> to vector<16x512xbf16>
    %cst_11 = arith.constant 1.000980e-02 : bf16
    %16 = vector.broadcast %cst_11 : bf16 to vector<16x512xbf16>
    %17 = arith.mulf %16, %15 : vector<16x512xbf16>
    %18 = arith.maximumf %15, %17 : vector<16x512xbf16>
    %c0_12 = arith.constant 0 : index
    %c0_13 = arith.constant 0 : index
    %19 = vector.load %arg6[%c0_12, %c0_13] : memref<512x128xbf16, #tpu.memory_space<vmem>>, vector<512x128xbf16>
    %cst_14 = arith.constant dense<0.000000e+00> : vector<16x128xf32>
    %20 = tpu.matmul %18, %19, %cst_14 {dimension_numbers = #tpu.dot_dimension_numbers<[1], [0], [0], [1], [0, 0, 1, 1], [], []>} : vector<16x512xbf16>, vector<512x128xbf16>, vector<16x128xf32> -> vector<16x128xf32>
    %c0_15 = arith.constant 0 : index
    %c0_16 = arith.constant 0 : index
    %21 = vector.load %arg7[%c0_15, %c0_16] : memref<1x128xf32, #tpu.memory_space<vmem>>, vector<1x128xf32>
    %22 = vector.broadcast %21 : vector<1x128xf32> to vector<16x128xf32>
    %23 = arith.addf %20, %22 : vector<16x128xf32>
    %24 = math.tanh %23 : vector<16x128xf32>
    %25 = arith.mulf %24, %24 : vector<16x128xf32>
    %cst_17 = arith.constant dense<0.000000e+00> : vector<16xf32>
    %26 = vector.multi_reduction <add>, %25, %cst_17 [1] : vector<16x128xf32> to vector<16xf32>
    %27 = vector.shape_cast %26 : vector<16xf32> to vector<16x1xf32>
    %28 = math.rsqrt %27 : vector<16x1xf32>
    %29 = vector.broadcast %28 : vector<16x1xf32> to vector<16x128xf32>
    %30 = arith.mulf %24, %29 : vector<16x128xf32>
    %c0_18 = arith.constant 0 : index
    %c0_19 = arith.constant 0 : index
    %31 = vector.load %arg8[%c0_18, %c0_19] : memref<16x128xf32, #tpu.memory_space<vmem>>, vector<16x128xf32>
    tpu.vector_store %arg8[%c0_18, %c0_19], %30 {strides = array<i32>} : memref<16x128xf32, #tpu.memory_space<vmem>>, vector<16x128xf32>,
    return
  }
  func.func @transform_0(%arg0: i32) -> (i32, i32) {
    %c0_i32 = arith.constant 0 : i32
    %c0_i32_0 = arith.constant 0 : i32
    return %arg0, %c0_i32 : i32, i32
  }
  func.func @transform_1(%arg0: i32) -> (i32, i32) {
    %c0_i32 = arith.constant 0 : i32
    %c0_i32_0 = arith.constant 0 : i32
    %c0_i32_1 = arith.constant 0 : i32
    return %c0_i32, %c0_i32_0 : i32, i32
  }
  func.func @transform_2(%arg0: i32) -> (i32, i32) {
    %c0_i32 = arith.constant 0 : i32
    %c0_i32_0 = arith.constant 0 : i32
    %c0_i32_1 = arith.constant 0 : i32
    return %c0_i32, %c0_i32_0 : i32, i32
  }
  func.func @transform_3(%arg0: i32) -> (i32, i32) {
    %c0_i32 = arith.constant 0 : i32
    %c0_i32_0 = arith.constant 0 : i32
    %c0_i32_1 = arith.constant 0 : i32
    return %c0_i32, %c0_i32_0 : i32, i32
  }
  func.func @transform_4(%arg0: i32) -> (i32, i32) {
    %c0_i32 = arith.constant 0 : i32
    %c0_i32_0 = arith.constant 0 : i32
    %c0_i32_1 = arith.constant 0 : i32
    return %c0_i32, %c0_i32_0 : i32, i32
  }
  func.func @transform_5(%arg0: i32) -> (i32, i32) {
    %c0_i32 = arith.constant 0 : i32
    %c0_i32_0 = arith.constant 0 : i32
    %c0_i32_1 = arith.constant 0 : i32
    return %c0_i32, %c0_i32_0 : i32, i32
  }
  func.func @transform_6(%arg0: i32) -> (i32, i32) {
    %c0_i32 = arith.constant 0 : i32
    %c0_i32_0 = arith.constant 0 : i32
    %c0_i32_1 = arith.constant 0 : i32
    return %c0_i32, %c0_i32_0 : i32, i32
  }
  func.func @transform_7(%arg0: i32) -> (i32, i32) {
    %c0_i32 = arith.constant 0 : i32
    %c0_i32_0 = arith.constant 0 : i32
    return %arg0, %c0_i32 : i32, i32
  }
}

</mosaic_0001>

<llo_original>
// kernel: policy_forward.1
$region0: #{policy_forward.1}
  #allocation0 [shape = 'u32[]', space=smem, size = 0x4, offset = 0x4, fixed_abs, tag = 'smem constant byte address 0x4 - core index']
  #allocation1 [shape = 'u32[72,128]{1,0:T(1,128)}', space=vmem, size = 0x9000, scoped, tag = 'internal scratch']
  %s0 = inlined_call_operand.vmem [shape: bf16[16,128], index: 0, kind: input, shape index: {}]
  %s1 = inlined_call_operand.vmem [shape: bf16[128,512], index: 1, kind: input, shape index: {}]
  %s2 = inlined_call_operand.vmem [shape: f32[1,512], index: 2, kind: input, shape index: {}]
  %s3 = inlined_call_operand.vmem [shape: bf16[512,512], index: 3, kind: input, shape index: {}]
  %s4 = inlined_call_operand.vmem [shape: f32[1,512], index: 4, kind: input, shape index: {}]
  %s5 = inlined_call_operand.vmem [shape: bf16[512,128], index: 5, kind: input, shape index: {}]
  %s6 = inlined_call_operand.vmem [shape: f32[1,128], index: 6, kind: input, shape index: {}]
  %s7 = inlined_call_operand.vmem [shape: f32[16,128], index: 7, kind: output, shape index: {}]
  %s8 = sld [smem:[#allocation0]]
  $region38: #{policy_forward.1} parent=0
    _
  %s10 = ssub.s32 1, %s8
  %s11 = scalar_select 0, %s10, %s8
  // Predicated region
  $region2: #{policy_forward.1} parent=0 // pred_check
    _
  $region3: #{policy_forward.1} parent=0 // pred_check_branch
    %13 = sbr.rel (0) target = $region5
  $region4: #{policy_forward.1} parent=0 // pred_region
    _
  $region5: #{policy_forward.1} parent=0 // pred_fallthru
    _
  // Predicated region
  $region6: #{policy_forward.1} parent=0 // pred_check
    _
  $region7: #{policy_forward.1} parent=0 // pred_check_branch
    %15 = sbr.rel (0) target = $region9
  $region8: #{policy_forward.1} parent=0 // pred_region
    _
  $region9: #{policy_forward.1} parent=0 // pred_fallthru
    _
  // Predicated region
  $region10: #{policy_forward.1} parent=0 // pred_check
    _
  $region11: #{policy_forward.1} parent=0 // pred_check_branch
    %17 = sbr.rel (0) target = $region13
  $region12: #{policy_forward.1} parent=0 // pred_region
    _
  $region13: #{policy_forward.1} parent=0 // pred_fallthru
    _
  // Predicated region
  $region14: #{policy_forward.1} parent=0 // pred_check
    _
  $region15: #{policy_forward.1} parent=0 // pred_check_branch
    %19 = sbr.rel (0) target = $region17
  $region16: #{policy_forward.1} parent=0 // pred_region
    _
  $region17: #{policy_forward.1} parent=0 // pred_fallthru
    _
  // Predicated region
  $region18: #{policy_forward.1} parent=0 // pred_check
    _
  $region19: #{policy_forward.1} parent=0 // pred_check_branch
    %21 = sbr.rel (0) target = $region21
  $region20: #{policy_forward.1} parent=0 // pred_region
    _
  $region21: #{policy_forward.1} parent=0 // pred_fallthru
    _
  // Predicated region
  $region22: #{policy_forward.1} parent=0 // pred_check
    _
  $region23: #{policy_forward.1} parent=0 // pred_check_branch
    %23 = sbr.rel (0) target = $region25
  $region24: #{policy_forward.1} parent=0 // pred_region
    _
  $region25: #{policy_forward.1} parent=0 // pred_fallthru
    _
  // Predicated region
  $region26: #{policy_forward.1} parent=0 // pred_check
    _
  $region27: #{policy_forward.1} parent=0 // pred_check_branch
    %25 = sbr.rel (0) target = $region29
  $region28: #{policy_forward.1} parent=0 // pred_region
    _
  $region29: #{policy_forward.1} parent=0 // pred_fallthru
    _
  %v26 = vld [vmem:[%s0] sm:$0xf]
  %v27 = vld [vmem:[%s0 + $0x4] sm:$0xf]
  %v28 = vld [vmem:[%s1] sm:$0xff]
  %v29 = vld [vmem:[%s1 + $0x8] sm:$0xff]
  %v30 = vld [vmem:[%s1 + $0x10] sm:$0xff]
  %v31 = vld [vmem:[%s1 + $0x18] sm:$0xff]
  %v32 = vld [vmem:[%s1 + $0x20] sm:$0xff]
  %v33 = vld [vmem:[%s1 + $0x28] sm:$0xff]
  %v34 = vld [vmem:[%s1 + $0x30] sm:$0xff]
  %v35 = vld [vmem:[%s1 + $0x38] sm:$0xff]
  %v36 = vld [vmem:[%s1 + $0x40] sm:$0xff]
  %v37 = vld [vmem:[%s1 + $0x48] sm:$0xff]
  %v38 = vld [vmem:[%s1 + $0x50] sm:$0xff]
  %v39 = vld [vmem:[%s1 + $0x58] sm:$0xff]
  %v40 = vld [vmem:[%s1 + $0x60] sm:$0xff]
  %v41 = vld [vmem:[%s1 + $0x68] sm:$0xff]
  %v42 = vld [vmem:[%s1 + $0x70] sm:$0xff]
  %v43 = vld [vmem:[%s1 + $0x78] sm:$0xff]
  %v44 = vld [vmem:[%s1 + $0x80] sm:$0xff]
  %v45 = vld [vmem:[%s1 + $0x88] sm:$0xff]
  %v46 = vld [vmem:[%s1 + $0x90] sm:$0xff]
  %v47 = vld [vmem:[%s1 + $0x98] sm:$0xff]
  %v48 = vld [vmem:[%s1 + $0xa0] sm:$0xff]
  %v49 = vld [vmem:[%s1 + $0xa8] sm:$0xff]
  %v50 = vld [vmem:[%s1 + $0xb0] sm:$0xff]
  %v51 = vld [vmem:[%s1 + $0xb8] sm:$0xff]
  %v52 = vld [vmem:[%s1 + $0xc0] sm:$0xff]
  %v53 = vld [vmem:[%s1 + $0xc8] sm:$0xff]
  %v54 = vld [vmem:[%s1 + $0xd0] sm:$0xff]
  %v55 = vld [vmem:[%s1 + $0xd8] sm:$0xff]
  %v56 = vld [vmem:[%s1 + $0xe0] sm:$0xff]
  %v57 = vld [vmem:[%s1 + $0xe8] sm:$0xff]
  %v58 = vld [vmem:[%s1 + $0xf0] sm:$0xff]
  %v59 = vld [vmem:[%s1 + $0xf8] sm:$0xff]
  %v60 = vld [vmem:[%s2] sm:$0xf]
  %v62 = vperm.slane %v60, 0
  %v63 = vperm.slane %v60, 1
  %v64 = vperm.slane %v60, 2
  %v65 = vperm.slane %v60, 3
  %v72 = vunpack.c.l.b16 %v26
  %v73 = vunpack.c.l.b16 %v27
  %v74 = vpack.c.b16 %v73, %v72
  %v108 = vunpack.c.l.b16 %v28
  %v109 = vunpack.c.h.b16 %v28
  %v110 = vunpack.c.l.b16 %v29
  %v111 = vunpack.c.h.b16 %v29
  %v112 = vunpack.c.l.b16 %v30
  %v113 = vunpack.c.h.b16 %v30
  %v114 = vunpack.c.l.b16 %v31
  %v115 = vunpack.c.h.b16 %v31
  %v116 = vunpack.c.l.b16 %v32
  %v117 = vunpack.c.h.b16 %v32
  %v118 = vunpack.c.l.b16 %v33
  %v119 = vunpack.c.h.b16 %v33
  %v120 = vunpack.c.l.b16 %v34
  %v121 = vunpack.c.h.b16 %v34
  %v122 = vunpack.c.l.b16 %v35
  %v123 = vunpack.c.h.b16 %v35
  %v124 = vunpack.c.l.b16 %v36
  %v125 = vunpack.c.h.b16 %v36
  %v126 = vunpack.c.l.b16 %v37
  %v127 = vunpack.c.h.b16 %v37
  %v128 = vunpack.c.l.b16 %v38
  %v129 = vunpack.c.h.b16 %v38
  %v130 = vunpack.c.l.b16 %v39
  %v131 = vunpack.c.h.b16 %v39
  %v132 = vunpack.c.l.b16 %v40
  %v133 = vunpack.c.h.b16 %v40
  %v134 = vunpack.c.l.b16 %v41
  %v135 = vunpack.c.h.b16 %v41
  %v136 = vunpack.c.l.b16 %v42
  %v137 = vunpack.c.h.b16 %v42
  %v138 = vunpack.c.l.b16 %v43
  %v139 = vunpack.c.h.b16 %v43
  %v140 = vunpack.c.l.b16 %v44
  %v141 = vunpack.c.h.b16 %v44
  %v142 = vunpack.c.l.b16 %v45
  %v143 = vunpack.c.h.b16 %v45
  %v144 = vunpack.c.l.b16 %v46
  %v145 = vunpack.c.h.b16 %v46
  %v146 = vunpack.c.l.b16 %v47
  %v147 = vunpack.c.h.b16 %v47
  %v148 = vunpack.c.l.b16 %v48
  %v149 = vunpack.c.h.b16 %v48
  %v150 = vunpack.c.l.b16 %v49
  %v151 = vunpack.c.h.b16 %v49
  %v152 = vunpack.c.l.b16 %v50
  %v153 = vunpack.c.h.b16 %v50
  %v154 = vunpack.c.l.b16 %v51
  %v155 = vunpack.c.h.b16 %v51
  %v156 = vunpack.c.l.b16 %v52
  %v157 = vunpack.c.h.b16 %v52
  %v158 = vunpack.c.l.b16 %v53
  %v159 = vunpack.c.h.b16 %v53
  %v160 = vunpack.c.l.b16 %v54
  %v161 = vunpack.c.h.b16 %v54
  %v162 = vunpack.c.l.b16 %v55
  %v163 = vunpack.c.h.b16 %v55
  %v164 = vunpack.c.l.b16 %v56
  %v165 = vunpack.c.h.b16 %v56
  %v166 = vunpack.c.l.b16 %v57
  %v167 = vunpack.c.h.b16 %v57
  %v168 = vunpack.c.l.b16 %v58
  %v169 = vunpack.c.h.b16 %v58
  %v170 = vunpack.c.l.b16 %v59
  %v171 = vunpack.c.h.b16 %v59
  %v172 = vpack.c.b16 %v112, %v108
  %v173 = vpack.c.b16 %v113, %v109
  %v174 = vpack.c.b16 %v114, %v110
  %v175 = vpack.c.b16 %v115, %v111
  %v176 = vpack.c.b16 %v120, %v116
  %v177 = vpack.c.b16 %v121, %v117
  %v178 = vpack.c.b16 %v122, %v118
  %v179 = vpack.c.b16 %v123, %v119
  %v180 = vpack.c.b16 %v128, %v124
  %v181 = vpack.c.b16 %v129, %v125
  %v182 = vpack.c.b16 %v130, %v126
  %v183 = vpack.c.b16 %v131, %v127
  %v184 = vpack.c.b16 %v136, %v132
  %v185 = vpack.c.b16 %v137, %v133
  %v186 = vpack.c.b16 %v138, %v134
  %v187 = vpack.c.b16 %v139, %v135
  %v188 = vpack.c.b16 %v144, %v140
  %v189 = vpack.c.b16 %v145, %v141
  %v190 = vpack.c.b16 %v146, %v142
  %v191 = vpack.c.b16 %v147, %v143
  %v192 = vpack.c.b16 %v152, %v148
  %v193 = vpack.c.b16 %v153, %v149
  %v194 = vpack.c.b16 %v154, %v150
  %v195 = vpack.c.b16 %v155, %v151
  %v196 = vpack.c.b16 %v160, %v156
  %v197 = vpack.c.b16 %v161, %v157
  %v198 = vpack.c.b16 %v162, %v158
  %v199 = vpack.c.b16 %v163, %v159
  %v200 = vpack.c.b16 %v168, %v164
  %v201 = vpack.c.b16 %v169, %v165
  %v202 = vpack.c.b16 %v170, %v166
  %v203 = vpack.c.b16 %v171, %v167
  %236 = vmatpush.bf16.msra.mxu0 %v200
  %237 = vmatpush.bf16.msra.mxu0 %v196
  %238 = vmatpush.bf16.msra.mxu0 %v192
  %239 = vmatpush.bf16.msra.mxu0 %v188
  %240 = vmatpush.bf16.msra.mxu0 %v184
  %241 = vmatpush.bf16.msra.mxu0 %v180
  %242 = vmatpush.bf16.msra.mxu0 %v176
  %243 = vmatpush.bf16.msra.mxu0 %v172
  %244 = vmatmul.bf16.gmra.mxu0 %v74
  %v245 = vpop.f32.mrf.mxu0
  %v246 = vadd.f32 %v62, %v245
  %v247 = vpop.f32.mrf.mxu0
  %v248 = vadd.f32 %v62, %v247
  %249 = vdwg.mxu0
  %250 = vmatpush.bf16.msra.mxu0 %v201
  %251 = vmatpush.bf16.msra.mxu0 %v197
  %252 = vmatpush.bf16.msra.mxu0 %v193
  %253 = vmatpush.bf16.msra.mxu0 %v189
  %254 = vmatpush.bf16.msra.mxu0 %v185
  %255 = vmatpush.bf16.msra.mxu0 %v181
  %256 = vmatpush.bf16.msra.mxu0 %v177
  %257 = vmatpush.bf16.msra.mxu0 %v173
  %258 = vmatmul.bf16.gmra.mxu0 %v74
  %v259 = vpop.f32.mrf.mxu0
  %v260 = vadd.f32 %v63, %v259
  %v261 = vpop.f32.mrf.mxu0
  %v262 = vadd.f32 %v63, %v261
  %263 = vdwg.mxu0
  %264 = vmatpush.bf16.msra.mxu0 %v202
  %265 = vmatpush.bf16.msra.mxu0 %v198
  %266 = vmatpush.bf16.msra.mxu0 %v194
  %267 = vmatpush.bf16.msra.mxu0 %v190
  %268 = vmatpush.bf16.msra.mxu0 %v186
  %269 = vmatpush.bf16.msra.mxu0 %v182
  %270 = vmatpush.bf16.msra.mxu0 %v178
  %271 = vmatpush.bf16.msra.mxu0 %v174
  %272 = vmatmul.bf16.gmra.mxu0 %v74
  %v273 = vpop.f32.mrf.mxu0
  %v274 = vadd.f32 %v64, %v273
  %v275 = vpop.f32.mrf.mxu0
  %v276 = vadd.f32 %v64, %v275
  %277 = vdwg.mxu0
  %278 = vmatpush.bf16.msra.mxu0 %v203
  %279 = vmatpush.bf16.msra.mxu0 %v199
  %280 = vmatpush.bf16.msra.mxu0 %v195
  %281 = vmatpush.bf16.msra.mxu0 %v191
  %282 = vmatpush.bf16.msra.mxu0 %v187
  %283 = vmatpush.bf16.msra.mxu0 %v183
  %284 = vmatpush.bf16.msra.mxu0 %v179
  %285 = vmatpush.bf16.msra.mxu0 %v175
  %286 = vmatmul.bf16.gmra.mxu0 %v74
  %v287 = vpop.f32.mrf.mxu0
  %v288 = vadd.f32 %v65, %v287
  %v289 = vpop.f32.mrf.mxu0
  %v290 = vadd.f32 %v65, %v289
  %291 = vdwg.mxu0
  %v292 = vpack.c.bf16 %v260, %v246
  %v293 = vpack.c.bf16 %v288, %v274
  %v294 = vpack.c.bf16 %v262, %v248
  %v295 = vpack.c.bf16 %v290, %v276
  %v296 = vunpack.c.l.bf16 %v292
  %v297 = vunpack.c.h.bf16 %v292
  %v298 = vunpack.c.l.bf16 %v293
  %v299 = vunpack.c.h.bf16 %v293
  %v300 = vunpack.c.l.bf16 %v294
  %v301 = vunpack.c.h.bf16 %v294
  %v302 = vunpack.c.l.bf16 %v295
  %v303 = vunpack.c.h.bf16 %v295
  %v304 = vmul.f32 %v296, 0.010009766
  %v305 = vmul.f32 %v297, 0.010009766
  %v306 = vmul.f32 %v298, 0.010009766
  %v307 = vmul.f32 %v299, 0.010009766
  %v308 = vmul.f32 %v300, 0.010009766
  %v309 = vmul.f32 %v301, 0.010009766
  %v310 = vmul.f32 %v302, 0.010009766
  %v311 = vmul.f32 %v303, 0.010009766
  %v312 = vpack.c.bf16 %v305, %v304
  %v313 = vpack.c.bf16 %v307, %v306
  %v314 = vpack.c.bf16 %v309, %v308
  %v315 = vpack.c.bf16 %v311, %v310
  %v316 = vunpack.c.l.bf16 %v312
  %v317 = vunpack.c.h.bf16 %v312
  %v318 = vunpack.c.l.bf16 %v313
  %v319 = vunpack.c.h.bf16 %v313
  %v320 = vunpack.c.l.bf16 %v314
  %v321 = vunpack.c.h.bf16 %v314
  %v322 = vunpack.c.l.bf16 %v315
  %v323 = vunpack.c.h.bf16 %v315
  %v324 = vmax.f32 %v296, %v316
  %v325 = vmax.f32 %v297, %v317
  %v326 = vmax.f32 %v298, %v318
  %v327 = vmax.f32 %v299, %v319
  %v328 = vmax.f32 %v300, %v320
  %v329 = vmax.f32 %v301, %v321
  %v330 = vmax.f32 %v302, %v322
  %v331 = vmax.f32 %v303, %v323
  %v332 = vpack.c.bf16 %v328, %v324
  %v333 = vpack.c.bf16 %v329, %v325
  %v334 = vpack.c.bf16 %v330, %v326
  %v335 = vpack.c.bf16 %v331, %v327
  %v336 = vld [vmem:[%s3] sm:$0xff]
  %v337 = vld [vmem:[%s3 + $0x8] sm:$0xff]
  %v338 = vld [vmem:[%s3 + $0x10] sm:$0xff]
  %v339 = vld [vmem:[%s3 + $0x18] sm:$0xff]
  %v340 = vld [vmem:[%s3 + $0x20] sm:$0xff]
  %v341 = vld [vmem:[%s3 + $0x28] sm:$0xff]
  %v342 = vld [vmem:[%s3 + $0x30] sm:$0xff]
  %v343 = vld [vmem:[%s3 + $0x38] sm:$0xff]
  %v344 = vld [vmem:[%s3 + $0x40] sm:$0xff]
  %v345 = vld [vmem:[%s3 + $0x48] sm:$0xff]
  %v346 = vld [vmem:[%s3 + $0x50] sm:$0xff]
  %v347 = vld [vmem:[%s3 + $0x58] sm:$0xff]
  %v348 = vld [vmem:[%s3 + $0x60] sm:$0xff]
  %v349 = vld [vmem:[%s3 + $0x68] sm:$0xff]
  %v350 = vld [vmem:[%s3 + $0x70] sm:$0xff]
  %v351 = vld [vmem:[%s3 + $0x78] sm:$0xff]
  %v352 = vld [vmem:[%s3 + $0x80] sm:$0xff]
  %v353 = vld [vmem:[%s3 + $0x88] sm:$0xff]
  %v354 = vld [vmem:[%s3 + $0x90] sm:$0xff]
  %v355 = vld [vmem:[%s3 + $0x98] sm:$0xff]
  %v356 = vld [vmem:[%s3 + $0xa0] sm:$0xff]
  %v357 = vld [vmem:[%s3 + $0xa8] sm:$0xff]
  %v358 = vld [vmem:[%s3 + $0xb0] sm:$0xff]
  %v359 = vld [vmem:[%s3 + $0xb8] sm:$0xff]
  %v360 = vld [vmem:[%s3 + $0xc0] sm:$0xff]
  %v361 = vld [vmem:[%s3 + $0xc8] sm:$0xff]
  %v362 = vld [vmem:[%s3 + $0xd0] sm:$0xff]
  %v363 = vld [vmem:[%s3 + $0xd8] sm:$0xff]
  %v364 = vld [vmem:[%s3 + $0xe0] sm:$0xff]
  %v365 = vld [vmem:[%s3 + $0xe8] sm:$0xff]
  %v366 = vld [vmem:[%s3 + $0xf0] sm:$0xff]
  %v367 = vld [vmem:[%s3 + $0xf8] sm:$0xff]
  %v368 = vld [vmem:[%s3 + $0x100] sm:$0xff]
  %v369 = vld [vmem:[%s3 + $0x108] sm:$0xff]
  %v370 = vld [vmem:[%s3 + $0x110] sm:$0xff]
  %v371 = vld [vmem:[%s3 + $0x118] sm:$0xff]
  %v372 = vld [vmem:[%s3 + $0x120] sm:$0xff]
  %v373 = vld [vmem:[%s3 + $0x128] sm:$0xff]
  %v374 = vld [vmem:[%s3 + $0x130] sm:$0xff]
  %v375 = vld [vmem:[%s3 + $0x138] sm:$0xff]
  %v376 = vld [vmem:[%s3 + $0x140] sm:$0xff]
  %v377 = vld [vmem:[%s3 + $0x148] sm:$0xff]
  %v378 = vld [vmem:[%s3 + $0x150] sm:$0xff]
  %v379 = vld [vmem:[%s3 + $0x158] sm:$0xff]
  %v380 = vld [vmem:[%s3 + $0x160] sm:$0xff]
  %v381 = vld [vmem:[%s3 + $0x168] sm:$0xff]
  %v382 = vld [vmem:[%s3 + $0x170] sm:$0xff]
  %v383 = vld [vmem:[%s3 + $0x178] sm:$0xff]
  %v384 = vld [vmem:[%s3 + $0x180] sm:$0xff]
  %v385 = vld [vmem:[%s3 + $0x188] sm:$0xff]
  %v386 = vld [vmem:[%s3 + $0x190] sm:$0xff]
  %v387 = vld [vmem:[%s3 + $0x198] sm:$0xff]
  %v388 = vld [vmem:[%s3 + $0x1a0] sm:$0xff]
  %v389 = vld [vmem:[%s3 + $0x1a8] sm:$0xff]
  %v390 = vld [vmem:[%s3 + $0x1b0] sm:$0xff]
  %v391 = vld [vmem:[%s3 + $0x1b8] sm:$0xff]
  %v392 = vld [vmem:[%s3 + $0x1c0] sm:$0xff]
  %v393 = vld [vmem:[%s3 + $0x1c8] sm:$0xff]
  %v394 = vld [vmem:[%s3 + $0x1d0] sm:$0xff]
  %v395 = vld [vmem:[%s3 + $0x1d8] sm:$0xff]
  %v396 = vld [vmem:[%s3 + $0x1e0] sm:$0xff]
  %v397 = vld [vmem:[%s3 + $0x1e8] sm:$0xff]
  %v398 = vld [vmem:[%s3 + $0x1f0] sm:$0xff]
  %v399 = vld [vmem:[%s3 + $0x1f8] sm:$0xff]
  %v400 = vld [vmem:[%s3 + $0x200] sm:$0xff]
  %v401 = vld [vmem:[%s3 + $0x208] sm:$0xff]
  %v402 = vld [vmem:[%s3 + $0x210] sm:$0xff]
  %v403 = vld [vmem:[%s3 + $0x218] sm:$0xff]
  %v404 = vld [vmem:[%s3 + $0x220] sm:$0xff]
  %v405 = vld [vmem:[%s3 + $0x228] sm:$0xff]
  %v406 = vld [vmem:[%s3 + $0x230] sm:$0xff]
  %v407 = vld [vmem:[%s3 + $0x238] sm:$0xff]
  %v408 = vld [vmem:[%s3 + $0x240] sm:$0xff]
  %v409 = vld [vmem:[%s3 + $0x248] sm:$0xff]
  %v410 = vld [vmem:[%s3 + $0x250] sm:$0xff]
  %v411 = vld [vmem:[%s3 + $0x258] sm:$0xff]
  %v412 = vld [vmem:[%s3 + $0x260] sm:$0xff]
  %v413 = vld [vmem:[%s3 + $0x268] sm:$0xff]
  %v414 = vld [vmem:[%s3 + $0x270] sm:$0xff]
  %v415 = vld [vmem:[%s3 + $0x278] sm:$0xff]
  %v416 = vld [vmem:[%s3 + $0x280] sm:$0xff]
  %v417 = vld [vmem:[%s3 + $0x288] sm:$0xff]
  %v418 = vld [vmem:[%s3 + $0x290] sm:$0xff]
  %v419 = vld [vmem:[%s3 + $0x298] sm:$0xff]
  %v420 = vld [vmem:[%s3 + $0x2a0] sm:$0xff]
  %v421 = vld [vmem:[%s3 + $0x2a8] sm:$0xff]
  %v422 = vld [vmem:[%s3 + $0x2b0] sm:$0xff]
  %v423 = vld [vmem:[%s3 + $0x2b8] sm:$0xff]
  %v424 = vld [vmem:[%s3 + $0x2c0] sm:$0xff]
  %v425 = vld [vmem:[%s3 + $0x2c8] sm:$0xff]
  %v426 = vld [vmem:[%s3 + $0x2d0] sm:$0xff]
  %v427 = vld [vmem:[%s3 + $0x2d8] sm:$0xff]
  %v428 = vld [vmem:[%s3 + $0x2e0] sm:$0xff]
  %v429 = vld [vmem:[%s3 + $0x2e8] sm:$0xff]
  %v430 = vld [vmem:[%s3 + $0x2f0] sm:$0xff]
  %v431 = vld [vmem:[%s3 + $0x2f8] sm:$0xff]
  %v432 = vld [vmem:[%s3 + $0x300] sm:$0xff]
  %v433 = vld [vmem:[%s3 + $0x308] sm:$0xff]
  %v434 = vld [vmem:[%s3 + $0x310] sm:$0xff]
  %v435 = vld [vmem:[%s3 + $0x318] sm:$0xff]
  %v436 = vld [vmem:[%s3 + $0x320] sm:$0xff]
  %v437 = vld [vmem:[%s3 + $0x328] sm:$0xff]
  %v438 = vld [vmem:[%s3 + $0x330] sm:$0xff]
  %v439 = vld [vmem:[%s3 + $0x338] sm:$0xff]
  %v440 = vld [vmem:[%s3 + $0x340] sm:$0xff]
  %v441 = vld [vmem:[%s3 + $0x348] sm:$0xff]
  %v442 = vld [vmem:[%s3 + $0x350] sm:$0xff]
  %v443 = vld [vmem:[%s3 + $0x358] sm:$0xff]
  %v444 = vld [vmem:[%s3 + $0x360] sm:$0xff]
  %v445 = vld [vmem:[%s3 + $0x368] sm:$0xff]
  %v446 = vld [vmem:[%s3 + $0x370] sm:$0xff]
  %v447 = vld [vmem:[%s3 + $0x378] sm:$0xff]
  %v448 = vld [vmem:[%s3 + $0x380] sm:$0xff]
  %v449 = vld [vmem:[%s3 + $0x388] sm:$0xff]
  %v450 = vld [vmem:[%s3 + $0x390] sm:$0xff]
  %v451 = vld [vmem:[%s3 + $0x398] sm:$0xff]
  %v452 = vld [vmem:[%s3 + $0x3a0] sm:$0xff]
  %v453 = vld [vmem:[%s3 + $0x3a8] sm:$0xff]
  %v454 = vld [vmem:[%s3 + $0x3b0] sm:$0xff]
  %v455 = vld [vmem:[%s3 + $0x3b8] sm:$0xff]
  %v456 = vld [vmem:[%s3 + $0x3c0] sm:$0xff]
  %v457 = vld [vmem:[%s3 + $0x3c8] sm:$0xff]
  %v458 = vld [vmem:[%s3 + $0x3d0] sm:$0xff]
  %v459 = vld [vmem:[%s3 + $0x3d8] sm:$0xff]
  %v460 = vld [vmem:[%s3 + $0x3e0] sm:$0xff]
  %v461 = vld [vmem:[%s3 + $0x3e8] sm:$0xff]
  %v462 = vld [vmem:[%s3 + $0x3f0] sm:$0xff]
  %v463 = vld [vmem:[%s3 + $0x3f8] sm:$0xff]
  %v464 = vld [vmem:[%s4] sm:$0xf]
  %v466 = vperm.slane %v464, 0
  %v467 = vperm.slane %v464, 1
  %v468 = vperm.slane %v464, 2
  %v469 = vperm.slane %v464, 3
  %v602 = vunpack.c.l.b16 %v336
  %v603 = vunpack.c.h.b16 %v336
  %v604 = vunpack.c.l.b16 %v337
  %v605 = vunpack.c.h.b16 %v337
  %v606 = vunpack.c.l.b16 %v338
  %v607 = vunpack.c.h.b16 %v338
  %v608 = vunpack.c.l.b16 %v339
  %v609 = vunpack.c.h.b16 %v339
  %v610 = vunpack.c.l.b16 %v340
  %v611 = vunpack.c.h.b16 %v340
  %v612 = vunpack.c.l.b16 %v341
  %v613 = vunpack.c.h.b16 %v341
  %v614 = vunpack.c.l.b16 %v342
  %v615 = vunpack.c.h.b16 %v342
  %v616 = vunpack.c.l.b16 %v343
  %v617 = vunpack.c.h.b16 %v343
  %v618 = vunpack.c.l.b16 %v344
  %v619 = vunpack.c.h.b16 %v344
  %v620 = vunpack.c.l.b16 %v345
  %v621 = vunpack.c.h.b16 %v345
  %v622 = vunpack.c.l.b16 %v346
  %v623 = vunpack.c.h.b16 %v346
  %v624 = vunpack.c.l.b16 %v347
  %v625 = vunpack.c.h.b16 %v347
  %v626 = vunpack.c.l.b16 %v348
  %v627 = vunpack.c.h.b16 %v348
  %v628 = vunpack.c.l.b16 %v349
  %v629 = vunpack.c.h.b16 %v349
  %v630 = vunpack.c.l.b16 %v350
  %v631 = vunpack.c.h.b16 %v350
  %v632 = vunpack.c.l.b16 %v351
  %v633 = vunpack.c.h.b16 %v351
  %v634 = vunpack.c.l.b16 %v352
  %v635 = vunpack.c.h.b16 %v352
  %v636 = vunpack.c.l.b16 %v353
  %v637 = vunpack.c.h.b16 %v353
  %v638 = vunpack.c.l.b16 %v354
  %v639 = vunpack.c.h.b16 %v354
  %v640 = vunpack.c.l.b16 %v355
  %v641 = vunpack.c.h.b16 %v355
  %v642 = vunpack.c.l.b16 %v356
  %v643 = vunpack.c.h.b16 %v356
  %v644 = vunpack.c.l.b16 %v357
  %v645 = vunpack.c.h.b16 %v357
  %v646 = vunpack.c.l.b16 %v358
  %v647 = vunpack.c.h.b16 %v358
  %v648 = vunpack.c.l.b16 %v359
  %v649 = vunpack.c.h.b16 %v359
  %v650 = vunpack.c.l.b16 %v360
  %v651 = vunpack.c.h.b16 %v360
  %v652 = vunpack.c.l.b16 %v361
  %v653 = vunpack.c.h.b16 %v361
  %v654 = vunpack.c.l.b16 %v362
  %v655 = vunpack.c.h.b16 %v362
  %v656 = vunpack.c.l.b16 %v363
  %v657 = vunpack.c.h.b16 %v363
  %v658 = vunpack.c.l.b16 %v364
  %v659 = vunpack.c.h.b16 %v364
  %v660 = vunpack.c.l.b16 %v365
  %v661 = vunpack.c.h.b16 %v365
  %v662 = vunpack.c.l.b16 %v366
  %v663 = vunpack.c.h.b16 %v366
  %v664 = vunpack.c.l.b16 %v367
  %v665 = vunpack.c.h.b16 %v367
  %v666 = vunpack.c.l.b16 %v368
  %v667 = vunpack.c.h.b16 %v368
  %v668 = vunpack.c.l.b16 %v369
  %v669 = vunpack.c.h.b16 %v369
  %v670 = vunpack.c.l.b16 %v370
  %v671 = vunpack.c.h.b16 %v370
  %v672 = vunpack.c.l.b16 %v371
  %v673 = vunpack.c.h.b16 %v371
  %v674 = vunpack.c.l.b16 %v372
  %v675 = vunpack.c.h.b16 %v372
  %v676 = vunpack.c.l.b16 %v373
  %v677 = vunpack.c.h.b16 %v373
  %v678 = vunpack.c.l.b16 %v374
  %v679 = vunpack.c.h.b16 %v374
  %v680 = vunpack.c.l.b16 %v375
  %v681 = vunpack.c.h.b16 %v375
  %v682 = vunpack.c.l.b16 %v376
  %v683 = vunpack.c.h.b16 %v376
  %v684 = vunpack.c.l.b16 %v377
  %v685 = vunpack.c.h.b16 %v377
  %v686 = vunpack.c.l.b16 %v378
  %v687 = vunpack.c.h.b16 %v378
  %v688 = vunpack.c.l.b16 %v379
  %v689 = vunpack.c.h.b16 %v379
  %v690 = vunpack.c.l.b16 %v380
  %v691 = vunpack.c.h.b16 %v380
  %v692 = vunpack.c.l.b16 %v381
  %v693 = vunpack.c.h.b16 %v381
  %v694 = vunpack.c.l.b16 %v382
  %v695 = vunpack.c.h.b16 %v382
  %v696 = vunpack.c.l.b16 %v383
  %v697 = vunpack.c.h.b16 %v383
  %v698 = vunpack.c.l.b16 %v384
  %v699 = vunpack.c.h.b16 %v384
  %v700 = vunpack.c.l.b16 %v385
  %v701 = vunpack.c.h.b16 %v385
  %v702 = vunpack.c.l.b16 %v386
  %v703 = vunpack.c.h.b16 %v386
  %v704 = vunpack.c.l.b16 %v387
  %v705 = vunpack.c.h.b16 %v387
  %v706 = vunpack.c.l.b16 %v388
  %v707 = vunpack.c.h.b16 %v388
  %v708 = vunpack.c.l.b16 %v389
  %v709 = vunpack.c.h.b16 %v389
  %v710 = vunpack.c.l.b16 %v390
  %v711 = vunpack.c.h.b16 %v390
  %v712 = vunpack.c.l.b16 %v391
  %v713 = vunpack.c.h.b16 %v391
  %v714 = vunpack.c.l.b16 %v392
  %v715 = vunpack.c.h.b16 %v392
  %v716 = vunpack.c.l.b16 %v393
  %v717 = vunpack.c.h.b16 %v393
  %v718 = vunpack.c.l.b16 %v394
  %v719 = vunpack.c.h.b16 %v394
  %v720 = vunpack.c.l.b16 %v395
  %v721 = vunpack.c.h.b16 %v395
  %v722 = vunpack.c.l.b16 %v396
  %v723 = vunpack.c.h.b16 %v396
  %v724 = vunpack.c.l.b16 %v397
  %v725 = vunpack.c.h.b16 %v397
  %v726 = vunpack.c.l.b16 %v398
  %v727 = vunpack.c.h.b16 %v398
  %v728 = vunpack.c.l.b16 %v399
  %v729 = vunpack.c.h.b16 %v399
  %v730 = vunpack.c.l.b16 %v400
  %v731 = vunpack.c.h.b16 %v400
  %v732 = vunpack.c.l.b16 %v401
  %v733 = vunpack.c.h.b16 %v401
  %v734 = vunpack.c.l.b16 %v402
  %v735 = vunpack.c.h.b16 %v402
  %v736 = vunpack.c.l.b16 %v403
  %v737 = vunpack.c.h.b16 %v403
  %v738 = vunpack.c.l.b16 %v404
  %v739 = vunpack.c.h.b16 %v404
  %v740 = vunpack.c.l.b16 %v405
  %v741 = vunpack.c.h.b16 %v405
  %v742 = vunpack.c.l.b16 %v406
  %v743 = vunpack.c.h.b16 %v406
  %v744 = vunpack.c.l.b16 %v407
  %v745 = vunpack.c.h.b16 %v407
  %v746 = vunpack.c.l.b16 %v408
  %v747 = vunpack.c.h.b16 %v408
  %v748 = vunpack.c.l.b16 %v409
  %v749 = vunpack.c.h.b16 %v409
  %v750 = vunpack.c.l.b16 %v410
  %v751 = vunpack.c.h.b16 %v410
  %v752 = vunpack.c.l.b16 %v411
  %v753 = vunpack.c.h.b16 %v411
  %v754 = vunpack.c.l.b16 %v412
  %v755 = vunpack.c.h.b16 %v412
  %v756 = vunpack.c.l.b16 %v413
  %v757 = vunpack.c.h.b16 %v413
  %v758 = vunpack.c.l.b16 %v414
  %v759 = vunpack.c.h.b16 %v414
  %v760 = vunpack.c.l.b16 %v415
  %v761 = vunpack.c.h.b16 %v415
  %v762 = vunpack.c.l.b16 %v416
  %v763 = vunpack.c.h.b16 %v416
  %v764 = vunpack.c.l.b16 %v417
  %v765 = vunpack.c.h.b16 %v417
  %v766 = vunpack.c.l.b16 %v418
  %v767 = vunpack.c.h.b16 %v418
  %v768 = vunpack.c.l.b16 %v419
  %v769 = vunpack.c.h.b16 %v419
  %v770 = vunpack.c.l.b16 %v420
  %v771 = vunpack.c.h.b16 %v420
  %v772 = vunpack.c.l.b16 %v421
  %v773 = vunpack.c.h.b16 %v421
  %v774 = vunpack.c.l.b16 %v422
  %v775 = vunpack.c.h.b16 %v422
  %v776 = vunpack.c.l.b16 %v423
  %v777 = vunpack.c.h.b16 %v423
  %v778 = vunpack.c.l.b16 %v424
  %v779 = vunpack.c.h.b16 %v424
  %v780 = vunpack.c.l.b16 %v425
  %v781 = vunpack.c.h.b16 %v425
  %v782 = vunpack.c.l.b16 %v426
  %v783 = vunpack.c.h.b16 %v426
  %v784 = vunpack.c.l.b16 %v427
  %v785 = vunpack.c.h.b16 %v427
  %v786 = vunpack.c.l.b16 %v428
  %v787 = vunpack.c.h.b16 %v428
  %v788 = vunpack.c.l.b16 %v429
  %v789 = vunpack.c.h.b16 %v429
  %v790 = vunpack.c.l.b16 %v430
  %v791 = vunpack.c.h.b16 %v430
  %v792 = vunpack.c.l.b16 %v431
  %v793 = vunpack.c.h.b16 %v431
  %v794 = vunpack.c.l.b16 %v432
  %v795 = vunpack.c.h.b16 %v432
  %v796 = vunpack.c.l.b16 %v433
  %v797 = vunpack.c.h.b16 %v433
  %v798 = vunpack.c.l.b16 %v434
  %v799 = vunpack.c.h.b16 %v434
  %v800 = vunpack.c.l.b16 %v435
  %v801 = vunpack.c.h.b16 %v435
  %v802 = vunpack.c.l.b16 %v436
  %v803 = vunpack.c.h.b16 %v436
  %v804 = vunpack.c.l.b16 %v437
  %v805 = vunpack.c.h.b16 %v437
  %v806 = vunpack.c.l.b16 %v438
  %v807 = vunpack.c.h.b16 %v438
  %v808 = vunpack.c.l.b16 %v439
  %v809 = vunpack.c.h.b16 %v439
  %v810 = vunpack.c.l.b16 %v440
  %v811 = vunpack.c.h.b16 %v440
  %v812 = vunpack.c.l.b16 %v441
  %v813 = vunpack.c.h.b16 %v441
  %v814 = vunpack.c.l.b16 %v442
  %v815 = vunpack.c.h.b16 %v442
  %v816 = vunpack.c.l.b16 %v443
  %v817 = vunpack.c.h.b16 %v443
  %v818 = vunpack.c.l.b16 %v444
  %v819 = vunpack.c.h.b16 %v444
  %v820 = vunpack.c.l.b16 %v445
  %v821 = vunpack.c.h.b16 %v445
  %v822 = vunpack.c.l.b16 %v446
  %v823 = vunpack.c.h.b16 %v446
  %v824 = vunpack.c.l.b16 %v447
  %v825 = vunpack.c.h.b16 %v447
  %v826 = vunpack.c.l.b16 %v448
  %v827 = vunpack.c.h.b16 %v448
  %v828 = vunpack.c.l.b16 %v449
  %v829 = vunpack.c.h.b16 %v449
  %v830 = vunpack.c.l.b16 %v450
  %v831 = vunpack.c.h.b16 %v450
  %v832 = vunpack.c.l.b16 %v451
  %v833 = vunpack.c.h.b16 %v451
  %v834 = vunpack.c.l.b16 %v452
  %v835 = vunpack.c.h.b16 %v452
  %v836 = vunpack.c.l.b16 %v453
  %v837 = vunpack.c.h.b16 %v453
  %v838 = vunpack.c.l.b16 %v454
  %v839 = vunpack.c.h.b16 %v454
  %v840 = vunpack.c.l.b16 %v455
  %v841 = vunpack.c.h.b16 %v455
  %v842 = vunpack.c.l.b16 %v456
  %v843 = vunpack.c.h.b16 %v456
  %v844 = vunpack.c.l.b16 %v457
  %v845 = vunpack.c.h.b16 %v457
  %v846 = vunpack.c.l.b16 %v458
  %v847 = vunpack.c.h.b16 %v458
  %v848 = vunpack.c.l.b16 %v459
  %v849 = vunpack.c.h.b16 %v459
  %v850 = vunpack.c.l.b16 %v460
  %v851 = vunpack.c.h.b16 %v460
  %v852 = vunpack.c.l.b16 %v461
  %v853 = vunpack.c.h.b16 %v461
  %v854 = vunpack.c.l.b16 %v462
  %v855 = vunpack.c.h.b16 %v462
  %v856 = vunpack.c.l.b16 %v463
  %v857 = vunpack.c.h.b16 %v463
  %v858 = vpack.c.b16 %v606, %v602
  %v859 = vpack.c.b16 %v607, %v603
  %v860 = vpack.c.b16 %v608, %v604
  %v861 = vpack.c.b16 %v609, %v605
  %v862 = vpack.c.b16 %v614, %v610
  %v863 = vpack.c.b16 %v615, %v611
  %v864 = vpack.c.b16 %v616, %v612
  %v865 = vpack.c.b16 %v617, %v613
  %v866 = vpack.c.b16 %v622, %v618
  %v867 = vpack.c.b16 %v623, %v619
  %v868 = vpack.c.b16 %v624, %v620
  %v869 = vpack.c.b16 %v625, %v621
  %v870 = vpack.c.b16 %v630, %v626
  %v871 = vpack.c.b16 %v631, %v627
  %v872 = vpack.c.b16 %v632, %v628
  %v873 = vpack.c.b16 %v633, %v629
  %v874 = vpack.c.b16 %v638, %v634
  %v875 = vpack.c.b16 %v639, %v635
  %v876 = vpack.c.b16 %v640, %v636
  %v877 = vpack.c.b16 %v641, %v637
  %v878 = vpack.c.b16 %v646, %v642
  %v879 = vpack.c.b16 %v647, %v643
  %v880 = vpack.c.b16 %v648, %v644
  %v881 = vpack.c.b16 %v649, %v645
  %v882 = vpack.c.b16 %v654, %v650
  %v883 = vpack.c.b16 %v655, %v651
  %v884 = vpack.c.b16 %v656, %v652
  %v885 = vpack.c.b16 %v657, %v653
  %v886 = vpack.c.b16 %v662, %v658
  %v887 = vpack.c.b16 %v663, %v659
  %v888 = vpack.c.b16 %v664, %v660
  %v889 = vpack.c.b16 %v665, %v661
  %v890 = vpack.c.b16 %v670, %v666
  %v891 = vpack.c.b16 %v671, %v667
  %v892 = vpack.c.b16 %v672, %v668
  %v893 = vpack.c.b16 %v673, %v669
  %v894 = vpack.c.b16 %v678, %v674
  %v895 = vpack.c.b16 %v679, %v675
  %v896 = vpack.c.b16 %v680, %v676
  %v897 = vpack.c.b16 %v681, %v677
  %v898 = vpack.c.b16 %v686, %v682
  %v899 = vpack.c.b16 %v687, %v683
  %v900 = vpack.c.b16 %v688, %v684
  %v901 = vpack.c.b16 %v689, %v685
  %v902 = vpack.c.b16 %v694, %v690
  %v903 = vpack.c.b16 %v695, %v691
  %v904 = vpack.c.b16 %v696, %v692
  %v905 = vpack.c.b16 %v697, %v693
  %v906 = vpack.c.b16 %v702, %v698
  %v907 = vpack.c.b16 %v703, %v699
  %v908 = vpack.c.b16 %v704, %v700
  %v909 = vpack.c.b16 %v705, %v701
  %v910 = vpack.c.b16 %v710, %v706
  %v911 = vpack.c.b16 %v711, %v707
  %v912 = vpack.c.b16 %v712, %v708
  %v913 = vpack.c.b16 %v713, %v709
  %v914 = vpack.c.b16 %v718, %v714
  %v915 = vpack.c.b16 %v719, %v715
  %v916 = vpack.c.b16 %v720, %v716
  %v917 = vpack.c.b16 %v721, %v717
  %v918 = vpack.c.b16 %v726, %v722
  %v919 = vpack.c.b16 %v727, %v723
  %v920 = vpack.c.b16 %v728, %v724
  %v921 = vpack.c.b16 %v729, %v725
  %v922 = vpack.c.b16 %v734, %v730
  %v923 = vpack.c.b16 %v735, %v731
  %v924 = vpack.c.b16 %v736, %v732
  %v925 = vpack.c.b16 %v737, %v733
  %v926 = vpack.c.b16 %v742, %v738
  %v927 = vpack.c.b16 %v743, %v739
  %v928 = vpack.c.b16 %v744, %v740
  %v929 = vpack.c.b16 %v745, %v741
  %v930 = vpack.c.b16 %v750, %v746
  %v931 = vpack.c.b16 %v751, %v747
  %v932 = vpack.c.b16 %v752, %v748
  %v933 = vpack.c.b16 %v753, %v749
  %v934 = vpack.c.b16 %v758, %v754
  %v935 = vpack.c.b16 %v759, %v755
  %v936 = vpack.c.b16 %v760, %v756
  %v937 = vpack.c.b16 %v761, %v757
  %v938 = vpack.c.b16 %v766, %v762
  %v939 = vpack.c.b16 %v767, %v763
  %v940 = vpack.c.b16 %v768, %v764
  %v941 = vpack.c.b16 %v769, %v765
  %v942 = vpack.c.b16 %v774, %v770
  %v943 = vpack.c.b16 %v775, %v771
  %v944 = vpack.c.b16 %v776, %v772
  %v945 = vpack.c.b16 %v777, %v773
  %v946 = vpack.c.b16 %v782, %v778
  %v947 = vpack.c.b16 %v783, %v779
  %v948 = vpack.c.b16 %v784, %v780
  %v949 = vpack.c.b16 %v785, %v781
  %v950 = vpack.c.b16 %v790, %v786
  %v951 = vpack.c.b16 %v791, %v787
  %v952 = vpack.c.b16 %v792, %v788
  %v953 = vpack.c.b16 %v793, %v789
  %v954 = vpack.c.b16 %v798, %v794
  %v955 = vpack.c.b16 %v799, %v795
  %v956 = vpack.c.b16 %v800, %v796
  %v957 = vpack.c.b16 %v801, %v797
  %v958 = vpack.c.b16 %v806, %v802
  %v959 = vpack.c.b16 %v807, %v803
  %v960 = vpack.c.b16 %v808, %v804
  %v961 = vpack.c.b16 %v809, %v805
  %v962 = vpack.c.b16 %v814, %v810
  %v963 = vpack.c.b16 %v815, %v811
  %v964 = vpack.c.b16 %v816, %v812
  %v965 = vpack.c.b16 %v817, %v813
  %v966 = vpack.c.b16 %v822, %v818
  %v967 = vpack.c.b16 %v823, %v819
  %v968 = vpack.c.b16 %v824, %v820
  %v969 = vpack.c.b16 %v825, %v821
  %v970 = vpack.c.b16 %v830, %v826
  %v971 = vpack.c.b16 %v831, %v827
  %v972 = vpack.c.b16 %v832, %v828
  %v973 = vpack.c.b16 %v833, %v829
  %v974 = vpack.c.b16 %v838, %v834
  %v975 = vpack.c.b16 %v839, %v835
  %v976 = vpack.c.b16 %v840, %v836
  %v977 = vpack.c.b16 %v841, %v837
  %v978 = vpack.c.b16 %v846, %v842
  %v979 = vpack.c.b16 %v847, %v843
  %v980 = vpack.c.b16 %v848, %v844
  %v981 = vpack.c.b16 %v849, %v845
  %v982 = vpack.c.b16 %v854, %v850
  %v983 = vpack.c.b16 %v855, %v851
  %v984 = vpack.c.b16 %v856, %v852
  %v985 = vpack.c.b16 %v857, %v853
  %1114 = vmatpush.bf16.msra.mxu0 %v886
  %1115 = vmatpush.bf16.msra.mxu0 %v882
  %1116 = vmatpush.bf16.msra.mxu0 %v878
  %1117 = vmatpush.bf16.msra.mxu0 %v874
  %1118 = vmatpush.bf16.msra.mxu0 %v870
  %1119 = vmatpush.bf16.msra.mxu0 %v866
  %1120 = vmatpush.bf16.msra.mxu0 %v862
  %1121 = vmatpush.bf16.msra.mxu0 %v858
  %1122 = vmatmul.bf16.gmra.mxu0 %v332
  %v1123 = vpop.f32.mrf.mxu0
  %v1124 = vadd.f32 %v466, %v1123
  %v1125 = vpop.f32.mrf.mxu0
  %v1126 = vadd.f32 %v466, %v1125
  %1127 = vdwg.mxu0
  %1128 = vmatpush.bf16.msra.mxu0 %v918
  %1129 = vmatpush.bf16.msra.mxu0 %v914
  %1130 = vmatpush.bf16.msra.mxu0 %v910
  %1131 = vmatpush.bf16.msra.mxu0 %v906
  %1132 = vmatpush.bf16.msra.mxu0 %v902
  %1133 = vmatpush.bf16.msra.mxu0 %v898
  %1134 = vmatpush.bf16.msra.mxu0 %v894
  %1135 = vmatpush.bf16.msra.mxu0 %v890
  %1136 = vmatmul.bf16.gmra.mxu0 %v333
  %v1137 = vpop.f32.mrf.mxu0
  %v1138 = vadd.f32 %v1124, %v1137
  %v1139 = vpop.f32.mrf.mxu0
  %v1140 = vadd.f32 %v1126, %v1139
  %1141 = vdwg.mxu0
  %1142 = vmatpush.bf16.msra.mxu0 %v950
  %1143 = vmatpush.bf16.msra.mxu0 %v946
  %1144 = vmatpush.bf16.msra.mxu0 %v942
  %1145 = vmatpush.bf16.msra.mxu0 %v938
  %1146 = vmatpush.bf16.msra.mxu0 %v934
  %1147 = vmatpush.bf16.msra.mxu0 %v930
  %1148 = vmatpush.bf16.msra.mxu0 %v926
  %1149 = vmatpush.bf16.msra.mxu0 %v922
  %1150 = vmatmul.bf16.gmra.mxu0 %v334
  %v1151 = vpop.f32.mrf.mxu0
  %v1152 = vadd.f32 %v1138, %v1151
  %v1153 = vpop.f32.mrf.mxu0
  %v1154 = vadd.f32 %v1140, %v1153
  %1155 = vdwg.mxu0
  %1156 = vmatpush.bf16.msra.mxu0 %v982
  %1157 = vmatpush.bf16.msra.mxu0 %v978
  %1158 = vmatpush.bf16.msra.mxu0 %v974
  %1159 = vmatpush.bf16.msra.mxu0 %v970
  %1160 = vmatpush.bf16.msra.mxu0 %v966
  %1161 = vmatpush.bf16.msra.mxu0 %v962
  %1162 = vmatpush.bf16.msra.mxu0 %v958
  %1163 = vmatpush.bf16.msra.mxu0 %v954
  %1164 = vmatmul.bf16.gmra.mxu0 %v335
  %v1165 = vpop.f32.mrf.mxu0
  %v1166 = vadd.f32 %v1152, %v1165
  %v1167 = vpop.f32.mrf.mxu0
  %v1168 = vadd.f32 %v1154, %v1167
  %1169 = vdwg.mxu0
  %1170 = vmatpush.bf16.msra.mxu0 %v887
  %1171 = vmatpush.bf16.msra.mxu0 %v883
  %1172 = vmatpush.bf16.msra.mxu0 %v879
  %1173 = vmatpush.bf16.msra.mxu0 %v875
  %1174 = vmatpush.bf16.msra.mxu0 %v871
  %1175 = vmatpush.bf16.msra.mxu0 %v867
  %1176 = vmatpush.bf16.msra.mxu0 %v863
  %1177 = vmatpush.bf16.msra.mxu0 %v859
  %1178 = vmatmul.bf16.gmra.mxu0 %v332
  %v1179 = vpop.f32.mrf.mxu0
  %v1180 = vadd.f32 %v467, %v1179
  %v1181 = vpop.f32.mrf.mxu0
  %v1182 = vadd.f32 %v467, %v1181
  %1183 = vdwg.mxu0
  %1184 = vmatpush.bf16.msra.mxu0 %v919
  %1185 = vmatpush.bf16.msra.mxu0 %v915
  %1186 = vmatpush.bf16.msra.mxu0 %v911
  %1187 = vmatpush.bf16.msra.mxu0 %v907
  %1188 = vmatpush.bf16.msra.mxu0 %v903
  %1189 = vmatpush.bf16.msra.mxu0 %v899
  %1190 = vmatpush.bf16.msra.mxu0 %v895
  %1191 = vmatpush.bf16.msra.mxu0 %v891
  %1192 = vmatmul.bf16.gmra.mxu0 %v333
  %v1193 = vpop.f32.mrf.mxu0
  %v1194 = vadd.f32 %v1180, %v1193
  %v1195 = vpop.f32.mrf.mxu0
  %v1196 = vadd.f32 %v1182, %v1195
  %1197 = vdwg.mxu0
  %1198 = vmatpush.bf16.msra.mxu0 %v951
  %1199 = vmatpush.bf16.msra.mxu0 %v947
  %1200 = vmatpush.bf16.msra.mxu0 %v943
  %1201 = vmatpush.bf16.msra.mxu0 %v939
  %1202 = vmatpush.bf16.msra.mxu0 %v935
  %1203 = vmatpush.bf16.msra.mxu0 %v931
  %1204 = vmatpush.bf16.msra.mxu0 %v927
  %1205 = vmatpush.bf16.msra.mxu0 %v923
  %1206 = vmatmul.bf16.gmra.mxu0 %v334
  %v1207 = vpop.f32.mrf.mxu0
  %v1208 = vadd.f32 %v1194, %v1207
  %v1209 = vpop.f32.mrf.mxu0
  %v1210 = vadd.f32 %v1196, %v1209
  %1211 = vdwg.mxu0
  %1212 = vmatpush.bf16.msra.mxu0 %v983
  %1213 = vmatpush.bf16.msra.mxu0 %v979
  %1214 = vmatpush.bf16.msra.mxu0 %v975
  %1215 = vmatpush.bf16.msra.mxu0 %v971
  %1216 = vmatpush.bf16.msra.mxu0 %v967
  %1217 = vmatpush.bf16.msra.mxu0 %v963
  %1218 = vmatpush.bf16.msra.mxu0 %v959
  %1219 = vmatpush.bf16.msra.mxu0 %v955
  %1220 = vmatmul.bf16.gmra.mxu0 %v335
  %v1221 = vpop.f32.mrf.mxu0
  %v1222 = vadd.f32 %v1208, %v1221
  %v1223 = vpop.f32.mrf.mxu0
  %v1224 = vadd.f32 %v1210, %v1223
  %1225 = vdwg.mxu0
  %1226 = vmatpush.bf16.msra.mxu0 %v888
  %1227 = vmatpush.bf16.msra.mxu0 %v884
  %1228 = vmatpush.bf16.msra.mxu0 %v880
  %1229 = vmatpush.bf16.msra.mxu0 %v876
  %1230 = vmatpush.bf16.msra.mxu0 %v872
  %1231 = vmatpush.bf16.msra.mxu0 %v868
  %1232 = vmatpush.bf16.msra.mxu0 %v864
  %1233 = vmatpush.bf16.msra.mxu0 %v860
  %1234 = vmatmul.bf16.gmra.mxu0 %v332
  %v1235 = vpop.f32.mrf.mxu0
  %v1236 = vadd.f32 %v468, %v1235
  %v1237 = vpop.f32.mrf.mxu0
  %v1238 = vadd.f32 %v468, %v1237
  %1239 = vdwg.mxu0
  %1240 = vmatpush.bf16.msra.mxu0 %v920
  %1241 = vmatpush.bf16.msra.mxu0 %v916
  %1242 = vmatpush.bf16.msra.mxu0 %v912
  %1243 = vmatpush.bf16.msra.mxu0 %v908
  %1244 = vmatpush.bf16.msra.mxu0 %v904
  %1245 = vmatpush.bf16.msra.mxu0 %v900
  %1246 = vmatpush.bf16.msra.mxu0 %v896
  %1247 = vmatpush.bf16.msra.mxu0 %v892
  %1248 = vmatmul.bf16.gmra.mxu0 %v333
  %v1249 = vpop.f32.mrf.mxu0
  %v1250 = vadd.f32 %v1236, %v1249
  %v1251 = vpop.f32.mrf.mxu0
  %v1252 = vadd.f32 %v1238, %v1251
  %1253 = vdwg.mxu0
  %1254 = vmatpush.bf16.msra.mxu0 %v952
  %1255 = vmatpush.bf16.msra.mxu0 %v948
  %1256 = vmatpush.bf16.msra.mxu0 %v944
  %1257 = vmatpush.bf16.msra.mxu0 %v940
  %1258 = vmatpush.bf16.msra.mxu0 %v936
  %1259 = vmatpush.bf16.msra.mxu0 %v932
  %1260 = vmatpush.bf16.msra.mxu0 %v928
  %1261 = vmatpush.bf16.msra.mxu0 %v924
  %1262 = vmatmul.bf16.gmra.mxu0 %v334
  %v1263 = vpop.f32.mrf.mxu0
  %v1264 = vadd.f32 %v1250, %v1263
  %v1265 = vpop.f32.mrf.mxu0
  %v1266 = vadd.f32 %v1252, %v1265
  %1267 = vdwg.mxu0
  %1268 = vmatpush.bf16.msra.mxu0 %v984
  %1269 = vmatpush.bf16.msra.mxu0 %v980
  %1270 = vmatpush.bf16.msra.mxu0 %v976
  %1271 = vmatpush.bf16.msra.mxu0 %v972
  %1272 = vmatpush.bf16.msra.mxu0 %v968
  %1273 = vmatpush.bf16.msra.mxu0 %v964
  %1274 = vmatpush.bf16.msra.mxu0 %v960
  %1275 = vmatpush.bf16.msra.mxu0 %v956
  %1276 = vmatmul.bf16.gmra.mxu0 %v335
  %v1277 = vpop.f32.mrf.mxu0
  %v1278 = vadd.f32 %v1264, %v1277
  %v1279 = vpop.f32.mrf.mxu0
  %v1280 = vadd.f32 %v1266, %v1279
  %1281 = vdwg.mxu0
  %1282 = vmatpush.bf16.msra.mxu0 %v889
  %1283 = vmatpush.bf16.msra.mxu0 %v885
  %1284 = vmatpush.bf16.msra.mxu0 %v881
  %1285 = vmatpush.bf16.msra.mxu0 %v877
  %1286 = vmatpush.bf16.msra.mxu0 %v873
  %1287 = vmatpush.bf16.msra.mxu0 %v869
  %1288 = vmatpush.bf16.msra.mxu0 %v865
  %1289 = vmatpush.bf16.msra.mxu0 %v861
  %1290 = vmatmul.bf16.gmra.mxu0 %v332
  %v1291 = vpop.f32.mrf.mxu0
  %v1292 = vadd.f32 %v469, %v1291
  %v1293 = vpop.f32.mrf.mxu0
  %v1294 = vadd.f32 %v469, %v1293
  %1295 = vdwg.mxu0
  %1296 = vmatpush.bf16.msra.mxu0 %v921
  %1297 = vmatpush.bf16.msra.mxu0 %v917
  %1298 = vmatpush.bf16.msra.mxu0 %v913
  %1299 = vmatpush.bf16.msra.mxu0 %v909
  %1300 = vmatpush.bf16.msra.mxu0 %v905
  %1301 = vmatpush.bf16.msra.mxu0 %v901
  %1302 = vmatpush.bf16.msra.mxu0 %v897
  %1303 = vmatpush.bf16.msra.mxu0 %v893
  %1304 = vmatmul.bf16.gmra.mxu0 %v333
  %v1305 = vpop.f32.mrf.mxu0
  %v1306 = vadd.f32 %v1292, %v1305
  %v1307 = vpop.f32.mrf.mxu0
  %v1308 = vadd.f32 %v1294, %v1307
  %1309 = vdwg.mxu0
  %1310 = vmatpush.bf16.msra.mxu0 %v953
  %1311 = vmatpush.bf16.msra.mxu0 %v949
  %1312 = vmatpush.bf16.msra.mxu0 %v945
  %1313 = vmatpush.bf16.msra.mxu0 %v941
  %1314 = vmatpush.bf16.msra.mxu0 %v937
  %1315 = vmatpush.bf16.msra.mxu0 %v933
  %1316 = vmatpush.bf16.msra.mxu0 %v929
  %1317 = vmatpush.bf16.msra.mxu0 %v925
  %1318 = vmatmul.bf16.gmra.mxu0 %v334
  %v1319 = vpop.f32.mrf.mxu0
  %v1320 = vadd.f32 %v1306, %v1319
  %v1321 = vpop.f32.mrf.mxu0
  %v1322 = vadd.f32 %v1308, %v1321
  %1323 = vdwg.mxu0
  %1324 = vmatpush.bf16.msra.mxu0 %v985
  %1325 = vmatpush.bf16.msra.mxu0 %v981
  %1326 = vmatpush.bf16.msra.mxu0 %v977
  %1327 = vmatpush.bf16.msra.mxu0 %v973
  %1328 = vmatpush.bf16.msra.mxu0 %v969
  %1329 = vmatpush.bf16.msra.mxu0 %v965
  %1330 = vmatpush.bf16.msra.mxu0 %v961
  %1331 = vmatpush.bf16.msra.mxu0 %v957
  %1332 = vmatmul.bf16.gmra.mxu0 %v335
  %v1333 = vpop.f32.mrf.mxu0
  %v1334 = vadd.f32 %v1320, %v1333
  %v1335 = vpop.f32.mrf.mxu0
  %v1336 = vadd.f32 %v1322, %v1335
  %1337 = vdwg.mxu0
  %v1338 = vpack.c.bf16 %v1222, %v1166
  %v1339 = vpack.c.bf16 %v1334, %v1278
  %v1340 = vpack.c.bf16 %v1224, %v1168
  %v1341 = vpack.c.bf16 %v1336, %v1280
  %v1342 = vunpack.c.l.bf16 %v1338
  %v1343 = vunpack.c.h.bf16 %v1338
  %v1344 = vunpack.c.l.bf16 %v1339
  %v1345 = vunpack.c.h.bf16 %v1339
  %v1346 = vunpack.c.l.bf16 %v1340
  %v1347 = vunpack.c.h.bf16 %v1340
  %v1348 = vunpack.c.l.bf16 %v1341
  %v1349 = vunpack.c.h.bf16 %v1341
  %v1350 = vmul.f32 %v1342, 0.010009766
  %v1351 = vmul.f32 %v1343, 0.010009766
  %v1352 = vmul.f32 %v1344, 0.010009766
  %v1353 = vmul.f32 %v1345, 0.010009766
  %v1354 = vmul.f32 %v1346, 0.010009766
  %v1355 = vmul.f32 %v1347, 0.010009766
  %v1356 = vmul.f32 %v1348, 0.010009766
  %v1357 = vmul.f32 %v1349, 0.010009766
  %v1358 = vpack.c.bf16 %v1351, %v1350
  %v1359 = vpack.c.bf16 %v1353, %v1352
  %v1360 = vpack.c.bf16 %v1355, %v1354
  %v1361 = vpack.c.bf16 %v1357, %v1356
  %v1362 = vunpack.c.l.bf16 %v1358
  %v1363 = vunpack.c.h.bf16 %v1358
  %v1364 = vunpack.c.l.bf16 %v1359
  %v1365 = vunpack.c.h.bf16 %v1359
  %v1366 = vunpack.c.l.bf16 %v1360
  %v1367 = vunpack.c.h.bf16 %v1360
  %v1368 = vunpack.c.l.bf16 %v1361
  %v1369 = vunpack.c.h.bf16 %v1361
  %v1370 = vmax.f32 %v1342, %v1362
  %v1371 = vmax.f32 %v1343, %v1363
  %v1372 = vmax.f32 %v1344, %v1364
  %v1373 = vmax.f32 %v1345, %v1365
  %v1374 = vmax.f32 %v1346, %v1366
  %v1375 = vmax.f32 %v1347, %v1367
  %v1376 = vmax.f32 %v1348, %v1368
  %v1377 = vmax.f32 %v1349, %v1369
  %v1378 = vpack.c.bf16 %v1374, %v1370
  %v1379 = vpack.c.bf16 %v1375, %v1371
  %v1380 = vpack.c.bf16 %v1376, %v1372
  %v1381 = vpack.c.bf16 %v1377, %v1373
  %v1382 = vld [vmem:[%s5] sm:$0xf]
  %v1383 = vld [vmem:[%s5 + $0x4] sm:$0xf]
  %v1384 = vld [vmem:[%s5 + $0x8] sm:$0xf]
  %v1385 = vld [vmem:[%s5 + $0xc] sm:$0xf]
  %v1386 = vld [vmem:[%s5 + $0x10] sm:$0xf]
  %v1387 = vld [vmem:[%s5 + $0x14] sm:$0xf]
  %v1388 = vld [vmem:[%s5 + $0x18] sm:$0xf]
  %v1389 = vld [vmem:[%s5 + $0x1c] sm:$0xf]
  %v1390 = vld [vmem:[%s5 + $0x20] sm:$0xf]
  %v1391 = vld [vmem:[%s5 + $0x24] sm:$0xf]
  %v1392 = vld [vmem:[%s5 + $0x28] sm:$0xf]
  %v1393 = vld [vmem:[%s5 + $0x2c] sm:$0xf]
  %v1394 = vld [vmem:[%s5 + $0x30] sm:$0xf]
  %v1395 = vld [vmem:[%s5 + $0x34] sm:$0xf]
  %v1396 = vld [vmem:[%s5 + $0x38] sm:$0xf]
  %v1397 = vld [vmem:[%s5 + $0x3c] sm:$0xf]
  %v1398 = vld [vmem:[%s5 + $0x40] sm:$0xf]
  %v1399 = vld [vmem:[%s5 + $0x44] sm:$0xf]
  %v1400 = vld [vmem:[%s5 + $0x48] sm:$0xf]
  %v1401 = vld [vmem:[%s5 + $0x4c] sm:$0xf]
  %v1402 = vld [vmem:[%s5 + $0x50] sm:$0xf]
  %v1403 = vld [vmem:[%s5 + $0x54] sm:$0xf]
  %v1404 = vld [vmem:[%s5 + $0x58] sm:$0xf]
  %v1405 = vld [vmem:[%s5 + $0x5c] sm:$0xf]
  %v1406 = vld [vmem:[%s5 + $0x60] sm:$0xf]
  %v1407 = vld [vmem:[%s5 + $0x64] sm:$0xf]
  %v1408 = vld [vmem:[%s5 + $0x68] sm:$0xf]
  %v1409 = vld [vmem:[%s5 + $0x6c] sm:$0xf]
  %v1410 = vld [vmem:[%s5 + $0x70] sm:$0xf]
  %v1411 = vld [vmem:[%s5 + $0x74] sm:$0xf]
  %v1412 = vld [vmem:[%s5 + $0x78] sm:$0xf]
  %v1413 = vld [vmem:[%s5 + $0x7c] sm:$0xf]
  %v1414 = vld [vmem:[%s5 + $0x80] sm:$0xf]
  %v1415 = vld [vmem:[%s5 + $0x84] sm:$0xf]
  %v1416 = vld [vmem:[%s5 + $0x88] sm:$0xf]
  %v1417 = vld [vmem:[%s5 + $0x8c] sm:$0xf]
  %v1418 = vld [vmem:[%s5 + $0x90] sm:$0xf]
  %v1419 = vld [vmem:[%s5 + $0x94] sm:$0xf]
  %v1420 = vld [vmem:[%s5 + $0x98] sm:$0xf]
  %v1421 = vld [vmem:[%s5 + $0x9c] sm:$0xf]
  %v1422 = vld [vmem:[%s5 + $0xa0] sm:$0xf]
  %v1423 = vld [vmem:[%s5 + $0xa4] sm:$0xf]
  %v1424 = vld [vmem:[%s5 + $0xa8] sm:$0xf]
  %v1425 = vld [vmem:[%s5 + $0xac] sm:$0xf]
  %v1426 = vld [vmem:[%s5 + $0xb0] sm:$0xf]
  %v1427 = vld [vmem:[%s5 + $0xb4] sm:$0xf]
  %v1428 = vld [vmem:[%s5 + $0xb8] sm:$0xf]
  %v1429 = vld [vmem:[%s5 + $0xbc] sm:$0xf]
  %v1430 = vld [vmem:[%s5 + $0xc0] sm:$0xf]
  %v1431 = vld [vmem:[%s5 + $0xc4] sm:$0xf]
  %v1432 = vld [vmem:[%s5 + $0xc8] sm:$0xf]
  %v1433 = vld [vmem:[%s5 + $0xcc] sm:$0xf]
  %v1434 = vld [vmem:[%s5 + $0xd0] sm:$0xf]
  %v1435 = vld [vmem:[%s5 + $0xd4] sm:$0xf]
  %v1436 = vld [vmem:[%s5 + $0xd8] sm:$0xf]
  %v1437 = vld [vmem:[%s5 + $0xdc] sm:$0xf]
  %v1438 = vld [vmem:[%s5 + $0xe0] sm:$0xf]
  %v1439 = vld [vmem:[%s5 + $0xe4] sm:$0xf]
  %v1440 = vld [vmem:[%s5 + $0xe8] sm:$0xf]
  %v1441 = vld [vmem:[%s5 + $0xec] sm:$0xf]
  %v1442 = vld [vmem:[%s5 + $0xf0] sm:$0xf]
  %v1443 = vld [vmem:[%s5 + $0xf4] sm:$0xf]
  %v1444 = vld [vmem:[%s5 + $0xf8] sm:$0xf]
  %v1445 = vld [vmem:[%s5 + $0xfc] sm:$0xf]
  %v1446 = vld [vmem:[%s6] sm:$0x1]
  %v1448 = vperm.slane %v1446, 0
  %v1514 = vunpack.c.l.b16 %v1382
  %v1515 = vunpack.c.l.b16 %v1383
  %v1516 = vunpack.c.l.b16 %v1384
  %v1517 = vunpack.c.l.b16 %v1385
  %v1518 = vunpack.c.l.b16 %v1386
  %v1519 = vunpack.c.l.b16 %v1387
  %v1520 = vunpack.c.l.b16 %v1388
  %v1521 = vunpack.c.l.b16 %v1389
  %v1522 = vunpack.c.l.b16 %v1390
  %v1523 = vunpack.c.l.b16 %v1391
  %v1524 = vunpack.c.l.b16 %v1392
  %v1525 = vunpack.c.l.b16 %v1393
  %v1526 = vunpack.c.l.b16 %v1394
  %v1527 = vunpack.c.l.b16 %v1395
  %v1528 = vunpack.c.l.b16 %v1396
  %v1529 = vunpack.c.l.b16 %v1397
  %v1530 = vunpack.c.l.b16 %v1398
  %v1531 = vunpack.c.l.b16 %v1399
  %v1532 = vunpack.c.l.b16 %v1400
  %v1533 = vunpack.c.l.b16 %v1401
  %v1534 = vunpack.c.l.b16 %v1402
  %v1535 = vunpack.c.l.b16 %v1403
  %v1536 = vunpack.c.l.b16 %v1404
  %v1537 = vunpack.c.l.b16 %v1405
  %v1538 = vunpack.c.l.b16 %v1406
  %v1539 = vunpack.c.l.b16 %v1407
  %v1540 = vunpack.c.l.b16 %v1408
  %v1541 = vunpack.c.l.b16 %v1409
  %v1542 = vunpack.c.l.b16 %v1410
  %v1543 = vunpack.c.l.b16 %v1411
  %v1544 = vunpack.c.l.b16 %v1412
  %v1545 = vunpack.c.l.b16 %v1413
  %v1546 = vunpack.c.l.b16 %v1414
  %v1547 = vunpack.c.l.b16 %v1415
  %v1548 = vunpack.c.l.b16 %v1416
  %v1549 = vunpack.c.l.b16 %v1417
  %v1550 = vunpack.c.l.b16 %v1418
  %v1551 = vunpack.c.l.b16 %v1419
  %v1552 = vunpack.c.l.b16 %v1420
  %v1553 = vunpack.c.l.b16 %v1421
  %v1554 = vunpack.c.l.b16 %v1422
  %v1555 = vunpack.c.l.b16 %v1423
  %v1556 = vunpack.c.l.b16 %v1424
  %v1557 = vunpack.c.l.b16 %v1425
  %v1558 = vunpack.c.l.b16 %v1426
  %v1559 = vunpack.c.l.b16 %v1427
  %v1560 = vunpack.c.l.b16 %v1428
  %v1561 = vunpack.c.l.b16 %v1429
  %v1562 = vunpack.c.l.b16 %v1430
  %v1563 = vunpack.c.l.b16 %v1431
  %v1564 = vunpack.c.l.b16 %v1432
  %v1565 = vunpack.c.l.b16 %v1433
  %v1566 = vunpack.c.l.b16 %v1434
  %v1567 = vunpack.c.l.b16 %v1435
  %v1568 = vunpack.c.l.b16 %v1436
  %v1569 = vunpack.c.l.b16 %v1437
  %v1570 = vunpack.c.l.b16 %v1438
  %v1571 = vunpack.c.l.b16 %v1439
  %v1572 = vunpack.c.l.b16 %v1440
  %v1573 = vunpack.c.l.b16 %v1441
  %v1574 = vunpack.c.l.b16 %v1442
  %v1575 = vunpack.c.l.b16 %v1443
  %v1576 = vunpack.c.l.b16 %v1444
  %v1577 = vunpack.c.l.b16 %v1445
  %v1578 = vpack.c.b16 %v1515, %v1514
  %v1579 = vpack.c.b16 %v1517, %v1516
  %v1580 = vpack.c.b16 %v1519, %v1518
  %v1581 = vpack.c.b16 %v1521, %v1520
  %v1582 = vpack.c.b16 %v1523, %v1522
  %v1583 = vpack.c.b16 %v1525, %v1524
  %v1584 = vpack.c.b16 %v1527, %v1526
  %v1585 = vpack.c.b16 %v1529, %v1528
  %v1586 = vpack.c.b16 %v1531, %v1530
  %v1587 = vpack.c.b16 %v1533, %v1532
  %v1588 = vpack.c.b16 %v1535, %v1534
  %v1589 = vpack.c.b16 %v1537, %v1536
  %v1590 = vpack.c.b16 %v1539, %v1538
  %v1591 = vpack.c.b16 %v1541, %v1540
  %v1592 = vpack.c.b16 %v1543, %v1542
  %v1593 = vpack.c.b16 %v1545, %v1544
  %v1594 = vpack.c.b16 %v1547, %v1546
  %v1595 = vpack.c.b16 %v1549, %v1548
  %v1596 = vpack.c.b16 %v1551, %v1550
  %v1597 = vpack.c.b16 %v1553, %v1552
  %v1598 = vpack.c.b16 %v1555, %v1554
  %v1599 = vpack.c.b16 %v1557, %v1556
  %v1600 = vpack.c.b16 %v1559, %v1558
  %v1601 = vpack.c.b16 %v1561, %v1560
  %v1602 = vpack.c.b16 %v1563, %v1562
  %v1603 = vpack.c.b16 %v1565, %v1564
  %v1604 = vpack.c.b16 %v1567, %v1566
  %v1605 = vpack.c.b16 %v1569, %v1568
  %v1606 = vpack.c.b16 %v1571, %v1570
  %v1607 = vpack.c.b16 %v1573, %v1572
  %v1608 = vpack.c.b16 %v1575, %v1574
  %v1609 = vpack.c.b16 %v1577, %v1576
  %1642 = vmatpush.bf16.msra.mxu0 %v1585
  %1643 = vmatpush.bf16.msra.mxu0 %v1584
  %1644 = vmatpush.bf16.msra.mxu0 %v1583
  %1645 = vmatpush.bf16.msra.mxu0 %v1582
  %1646 = vmatpush.bf16.msra.mxu0 %v1581
  %1647 = vmatpush.bf16.msra.mxu0 %v1580
  %1648 = vmatpush.bf16.msra.mxu0 %v1579
  %1649 = vmatpush.bf16.msra.mxu0 %v1578
  %1650 = vmatmul.bf16.gmra.mxu0 %v1378
  %v1651 = vpop.f32.mrf.mxu0
  %v1652 = vadd.f32 %v1448, %v1651
  %v1653 = vpop.f32.mrf.mxu0
  %v1654 = vadd.f32 %v1448, %v1653
  %1655 = vdwg.mxu0
  %1656 = vmatpush.bf16.msra.mxu0 %v1593
  %1657 = vmatpush.bf16.msra.mxu0 %v1592
  %1658 = vmatpush.bf16.msra.mxu0 %v1591
  %1659 = vmatpush.bf16.msra.mxu0 %v1590
  %1660 = vmatpush.bf16.msra.mxu0 %v1589
  %1661 = vmatpush.bf16.msra.mxu0 %v1588
  %1662 = vmatpush.bf16.msra.mxu0 %v1587
  %1663 = vmatpush.bf16.msra.mxu0 %v1586
  %1664 = vmatmul.bf16.gmra.mxu0 %v1379
  %v1665 = vpop.f32.mrf.mxu0
  %v1666 = vadd.f32 %v1652, %v1665
  %v1667 = vpop.f32.mrf.mxu0
  %v1668 = vadd.f32 %v1654, %v1667
  %1669 = vdwg.mxu0
  %1670 = vmatpush.bf16.msra.mxu0 %v1601
  %1671 = vmatpush.bf16.msra.mxu0 %v1600
  %1672 = vmatpush.bf16.msra.mxu0 %v1599
  %1673 = vmatpush.bf16.msra.mxu0 %v1598
  %1674 = vmatpush.bf16.msra.mxu0 %v1597
  %1675 = vmatpush.bf16.msra.mxu0 %v1596
  %1676 = vmatpush.bf16.msra.mxu0 %v1595
  %1677 = vmatpush.bf16.msra.mxu0 %v1594
  %1678 = vmatmul.bf16.gmra.mxu0 %v1380
  %v1679 = vpop.f32.mrf.mxu0
  %v1680 = vadd.f32 %v1666, %v1679
  %v1681 = vpop.f32.mrf.mxu0
  %v1682 = vadd.f32 %v1668, %v1681
  %1683 = vdwg.mxu0
  %1684 = vmatpush.bf16.msra.mxu0 %v1609
  %1685 = vmatpush.bf16.msra.mxu0 %v1608
  %1686 = vmatpush.bf16.msra.mxu0 %v1607
  %1687 = vmatpush.bf16.msra.mxu0 %v1606
  %1688 = vmatpush.bf16.msra.mxu0 %v1605
  %1689 = vmatpush.bf16.msra.mxu0 %v1604
  %1690 = vmatpush.bf16.msra.mxu0 %v1603
  %1691 = vmatpush.bf16.msra.mxu0 %v1602
  %1692 = vmatmul.bf16.gmra.mxu0 %v1381
  %v1693 = vpop.f32.mrf.mxu0
  %v1694 = vadd.f32 %v1680, %v1693
  %v1695 = vpop.f32.mrf.mxu0
  %v1696 = vadd.f32 %v1682, %v1695
  %1697 = vdwg.mxu0
  %v1698 = vtanh.pop %v1694
  %v1699 = vtanh.pop %v1696
  %v1700 = vmul.f32 %v1698, %v1698
  %v1701 = vmul.f32 %v1699, %v1699
  %1702 = vadd.xlane.f32.xlu0 %v1700
  %v1703 = vpop.xlane.xlu0 %1702
  %1704 = vadd.xlane.f32.xlu0 %v1701
  %v1705 = vpop.xlane.xlu0 %1704
  %v1706 = vrsqrt.pop %v1703
  %v1707 = vmul.f32 %v1706, %v1703
  %v1708 = vmul.f32 %v1707, %v1706
  %v1709 = vmul.f32 0.5, %v1708
  %v1710 = vsub.f32 1.5, %v1709
  %v1711 = vmul.f32 %v1706, %v1710
  %vm1712 = vweird.f32 %v1703
  %vm1713 = vweird.f32 %v1706
  %vm1714 = vmor %vm1712, %vm1713
  %v1715 = vsel %vm1714, %v1706, %v1711
  %v1716 = vrsqrt.pop %v1705
  %v1717 = vmul.f32 %v1716, %v1705
  %v1718 = vmul.f32 %v1717, %v1716
  %v1719 = vmul.f32 0.5, %v1718
  %v1720 = vsub.f32 1.5, %v1719
  %v1721 = vmul.f32 %v1716, %v1720
  %vm1722 = vweird.f32 %v1705
  %vm1723 = vweird.f32 %v1716
  %vm1724 = vmor %vm1722, %vm1723
  %v1725 = vsel %vm1724, %v1716, %v1721
  %v1726 = vmul.f32 %v1698, %v1715
  %v1727 = vmul.f32 %v1699, %v1725
  %1728 = vst [vmem:[%s7] sm:$0xff] %v1726
  %1729 = vst [vmem:[%s7 + $0x8] sm:$0xff] %v1727
  // Predicated region
  $region30: #{policy_forward.1} parent=0 // pred_check
    _
  $region31: #{policy_forward.1} parent=0 // pred_check_branch
    %1731 = sbr.rel (0) target = $region33
  $region32: #{policy_forward.1} parent=0 // pred_region
    _
  $region33: #{policy_forward.1} parent=0 // pred_fallthru
    _
  // Predicated region
  $region34: #{policy_forward.1} parent=0 // pred_check
    _
  $region35: #{policy_forward.1} parent=0 // pred_check_branch
    %1733 = sbr.rel (0) target = $region37
  $region36: #{policy_forward.1} parent=0 // pred_region
    _
  $region37: #{policy_forward.1} parent=0 // pred_fallthru
    _

</llo_original>
